<compile_context>
chip_gen: v5e
topology: v5e:2x2
jax: 0.10.0
libtpu: 0.0.40
codegen_flags: <defaults>
</compile_context>

<pallas_src>
import jax
import jax.numpy as jnp
from jax import lax
from jax.experimental import pallas as pl
from jax.experimental.pallas import tpu as pltpu


def _softmax_layer_kernel(x_ref, w_ref, o_ref):
    x = x_ref[...]                                   # (TB, E)
    w = w_ref[...]                                   # (TL, E)

    # Per-class inverse L2 norm, in f32 (VPU reduce + EUP rsqrt -> cheap,
    # hides under the MXU).  sqrt(max(sq, eps^2)) == max(||w||, eps).
    w_f32 = w.astype(jnp.float32)
    sq = jnp.sum(w_f32 * w_f32, axis=-1)             # (TL,)
    inv = lax.rsqrt(jnp.maximum(sq, 1e-24))          # (TL,)  == 1/max(||w||,1e-12)

    # y = x @ W^T via dot_general contracting last dims (no transpose of W).
    y = lax.dot_general(
        x, w,
        dimension_numbers=(((1,), (1,)), ((), ())),
        preferred_element_type=jnp.float32,
    )                                                # (TB, TL) f32

    # Scale output columns instead of normalizing W (mathematically identical).
    y = y * inv[None, :]
    o_ref[...] = y.astype(o_ref.dtype)


def _pick_tile(dim, preferred):
    """Largest preferred tile that evenly divides `dim`, else full extent."""
    for t in preferred:
        if dim >= t and dim % t == 0:
            return t
    return dim


def softmax_layer_forward(x, classifier, *, tb=None, tl=None):
    """x: (B, E), classifier: (L, E) -> (B, L) = x @ normalize(classifier).T"""
    B, E = x.shape
    L, E2 = classifier.shape
    assert E == E2, "embedding size mismatch"

    if tb is None:
        tb = _pick_tile(B, (256, 128))               # MXU-row-filling batch tile
    if tl is None:
        tl = _pick_tile(L, (512, 256, 128))          # lane-dense output tile
    assert B % tb == 0 and L % tl == 0

    grid = (B // tb, L // tl)

    return pl.pallas_call(
        _softmax_layer_kernel,
        out_shape=jax.ShapeDtypeStruct((B, L), x.dtype),
        grid_spec=pltpu.PrefetchScalarGridSpec(
            num_scalar_prefetch=0,
            grid=grid,
            in_specs=[
                pl.BlockSpec((tb, E), lambda i, j: (i, 0)),   # x tile
                pl.BlockSpec((tl, E), lambda i, j: (j, 0)),   # W tile
            ],
            out_specs=pl.BlockSpec((tb, tl), lambda i, j: (i, j)),
        ),
        compiler_params=pltpu.CompilerParams(
            dimension_semantics=("parallel", "parallel"),
        ),
    )(x, classifier)


def make_classifier(labels_num, emb_size, key):
    """Deterministic xavier_normal_ init for the classifier parameter."""
    std = (2.0 / (labels_num + emb_size)) ** 0.5
    return std * jax.random.normal(key, (labels_num, emb_size), dtype=jnp.float32)


def _reference(x, w):
    """Pure-JAX reference of the same math (F.normalize + linear)."""
    w_n = w / jnp.maximum(jnp.linalg.norm(w, axis=-1, keepdims=True), 1e-12)
    return jnp.dot(x, w_n.T, precision=lax.Precision.HIGHEST)


if __name__ == "__main__":
    key = jax.random.PRNGKey(0)
    kx, kw, kx2, kw2 = jax.random.split(key, 4)

    # --- Small shapes consistent with the module: SoftMaxLayer(s, labels_num, emb_size)
    # NOTE: `s` is stored by the module but unused in forward.
    batch, emb_size, labels_num = 8, 32, 16
    x = jax.random.normal(kx, (batch, emb_size), dtype=jnp.float32)
    classifier = make_classifier(labels_num, emb_size, kw)

    out = jax.block_until_ready(softmax_layer_forward(x, classifier))
    ref = _reference(x, classifier)
    assert out.shape == (batch, labels_num)
    assert jnp.allclose(out, ref, atol=1e-4, rtol=1e-4)

    # --- Exercise the tiled, multi-block grid path (128-multiple lane-dense tiles)
    B2, E2, L2 = 256, 128, 256
    x2 = jax.random.normal(kx2, (B2, E2), dtype=jnp.float32)
    w2 = make_classifier(L2, E2, kw2)
    out2 = jax.block_until_ready(softmax_layer_forward(x2, w2, tb=128, tl=128))
    ref2 = _reference(x2, w2)
    assert out2.shape == (B2, L2)
    assert jnp.allclose(out2, ref2, atol=1e-4, rtol=1e-4)

    print("KERNEL_OK")
</pallas_src>

<mosaic_0001>
module attributes {stable_mosaic.version = 11 : i64} {
  func.func @_softmax_layer_kernel(%arg0: i32, %arg1: i32, %arg2: memref<8x32xf32, #tpu.memory_space<vmem>>, %arg3: memref<16x32xf32, #tpu.memory_space<vmem>>, %arg4: memref<8x16xf32, #tpu.memory_space<vmem>>) attributes {dimension_semantics = [#tpu.dimension_semantics<parallel>, #tpu.dimension_semantics<parallel>], iteration_bounds = array<i64: 1, 1>, scalar_prefetch = 0 : i64, scratch_operands = 0 : i64, tpu.core_type = #tpu.core_type<tc>, window_params = [{transform_indices = @transform_0, window_bounds = array<i64: 8, 32>}, {transform_indices = @transform_1, window_bounds = array<i64: 16, 32>}, {transform_indices = @transform_2, window_bounds = array<i64: 8, 16>}]} {
    %c0 = arith.constant 0 : index
    %c0_0 = arith.constant 0 : index
    %0 = vector.load %arg2[%c0, %c0_0] : memref<8x32xf32, #tpu.memory_space<vmem>>, vector<8x32xf32>
    %c0_1 = arith.constant 0 : index
    %c0_2 = arith.constant 0 : index
    %1 = vector.load %arg3[%c0_1, %c0_2] : memref<16x32xf32, #tpu.memory_space<vmem>>, vector<16x32xf32>
    %2 = arith.mulf %1, %1 : vector<16x32xf32>
    %cst = arith.constant dense<0.000000e+00> : vector<16xf32>
    %3 = vector.multi_reduction <add>, %2, %cst [1] : vector<16x32xf32> to vector<16xf32>
    %cst_3 = arith.constant 1.000000e-24 : f32
    %4 = vector.broadcast %cst_3 : f32 to vector<16xf32>
    %5 = arith.maximumf %3, %4 : vector<16xf32>
    %6 = math.rsqrt %5 : vector<16xf32>
    %cst_4 = arith.constant dense<0.000000e+00> : vector<8x16xf32>
    %7 = tpu.matmul %0, %1, %cst_4 {dimension_numbers = #tpu.dot_dimension_numbers<[1], [1], [0], [0], [0, 0, 1, 0], [], []>} : vector<8x32xf32>, vector<16x32xf32>, vector<8x16xf32> -> vector<8x16xf32>
    %8 = vector.shape_cast %6 : vector<16xf32> to vector<1x16xf32>
    %9 = vector.broadcast %8 : vector<1x16xf32> to vector<8x16xf32>
    %10 = arith.mulf %7, %9 : vector<8x16xf32>
    %c0_5 = arith.constant 0 : index
    %c0_6 = arith.constant 0 : index
    %11 = vector.load %arg4[%c0_5, %c0_6] : memref<8x16xf32, #tpu.memory_space<vmem>>, vector<8x16xf32>
    tpu.vector_store %arg4[%c0_5, %c0_6], %10 {strides = array<i32>} : memref<8x16xf32, #tpu.memory_space<vmem>>, vector<8x16xf32>,
    return
  }
  func.func @transform_0(%arg0: i32, %arg1: i32) -> (i32, i32) {
    %c0_i32 = arith.constant 0 : i32
    %c0_i32_0 = arith.constant 0 : i32
    return %arg0, %c0_i32 : i32, i32
  }
  func.func @transform_1(%arg0: i32, %arg1: i32) -> (i32, i32) {
    %c0_i32 = arith.constant 0 : i32
    %c0_i32_0 = arith.constant 0 : i32
    return %arg1, %c0_i32 : i32, i32
  }
  func.func @transform_2(%arg0: i32, %arg1: i32) -> (i32, i32) {
    %c0_i32 = arith.constant 0 : i32
    return %arg0, %arg1 : i32, i32
  }
}

</mosaic_0001>

<llo_original>
// kernel: tpu_custom_call.1
$region0: #{tpu_custom_call.1}
  #allocation0 [shape = 'u32[]', space=smem, size = 0x4, offset = 0x4, fixed_abs, tag = 'smem constant byte address 0x4 - core index']
  #allocation1 [shape = 'u32[72,128]{1,0:T(1,128)}', space=vmem, size = 0x9000, scoped, tag = 'internal scratch']
  %s0 = inlined_call_operand.hbm [shape: f32[8,32], index: 0, kind: input, shape index: {}]
  %s1 = inlined_call_operand.hbm [shape: f32[16,32], index: 1, kind: input, shape index: {}]
  %s2 = inlined_call_operand.hbm [shape: f32[8,16], index: 2, kind: output, shape index: {}]
  %s3 = sld [smem:[#allocation0]]
  $region26: #{tpu_custom_call.1} parent=0
    _
  %s5 = ssub.s32 1, %s3
  %s6 = scalar_select 0, %s5, %s3
  $region1: #{tpu_custom_call.1} parent=0
    #allocation2 [shape = 'u8[4096]{0}', space=vmem, size = 0x1000, scoped, tag = 'input window, operand 0, single buffered']
    #allocation3 [shape = 's32[1]{0}', space=sflag, size = 0x4, scoped, tag = 'scoped memory for tpu_custom_call.1']
    #allocation4 [shape = 's32[1]{0}', space=sflag, size = 0x4, scoped, tag = 'scoped memory for tpu_custom_call.1']
    #allocation5 [shape = 'u8[8192]{0}', space=vmem, size = 0x2000, scoped, tag = 'input window, operand 1, single buffered']
    #allocation6 [shape = 's32[1]{0}', space=sflag, size = 0x4, scoped, tag = 'scoped memory for tpu_custom_call.1']
    #allocation7 [shape = 'u8[4096]{0}', space=vmem, size = 0x1000, scoped, tag = 'output window, operand 0, single buffered']
    %7 = vsyncpa [#allocation3], 0
    %8 = vsyncpa [#allocation6], 0
    %9 = vsyncpa [#allocation4], 0
    // Predicated region
    $region2: #{tpu_custom_call.1} parent=1 // pred_check
      _
    $region3: #{tpu_custom_call.1} parent=1 // pred_check_branch
      %11 = sbr.rel (0) target = $region5
    $region4: #{tpu_custom_call.1} parent=1 // pred_region
      %13 = vsyncadd [#allocation3], 0
      %s15 = sshll.u32 %s0, 4
      %s16 = int_to_ptr.hbm [resolvable:$true] %s15
      %s17 = sshll.u32 [#allocation2], 4
      %s18 = int_to_ptr.vmem [resolvable:$true] %s17
      %20 = dma.hbm_to_vmem [thread:$0]  %s16, 128, %s18, [#allocation3]
    $region5: #{tpu_custom_call.1} parent=1 // pred_fallthru
      _
    // Predicated region
    $region6: #{tpu_custom_call.1} parent=1 // pred_check
      _
    $region7: #{tpu_custom_call.1} parent=1 // pred_check_branch
      %22 = sbr.rel (0) target = $region9
    $region8: #{tpu_custom_call.1} parent=1 // pred_region
      %24 = vsyncadd [#allocation6], 0
      %s25 = sshll.u32 %s1, 4
      %s26 = int_to_ptr.hbm [resolvable:$true] %s25
      %s27 = sshll.u32 [#allocation5], 4
      %s28 = int_to_ptr.vmem [resolvable:$true] %s27
      %33 = dma.hbm_to_vmem [thread:$0]  %s26, 256, %s28, [#allocation6], 128, 128, 8
    $region9: #{tpu_custom_call.1} parent=1 // pred_fallthru
      _
    // Predicated region
    $region10: #{tpu_custom_call.1} parent=1 // pred_check
      _
    $region11: #{tpu_custom_call.1} parent=1 // pred_check_branch
      %35 = sbr.rel (0) target = $region13
    $region12: #{tpu_custom_call.1} parent=1 // pred_region
      %37 = dma.done [#allocation3], 128
    $region13: #{tpu_custom_call.1} parent=1 // pred_fallthru
      _
    // Predicated region
    $region14: #{tpu_custom_call.1} parent=1 // pred_check
      _
    $region15: #{tpu_custom_call.1} parent=1 // pred_check_branch
      %39 = sbr.rel (0) target = $region17
    $region16: #{tpu_custom_call.1} parent=1 // pred_region
      %41 = dma.done [#allocation6], 256
    $region17: #{tpu_custom_call.1} parent=1 // pred_fallthru
      _
    %v42 = vld [vmem:[#allocation2] sm:$0xff]
    %v43 = vld [vmem:[#allocation5] sm:$0xff]
    %v44 = vld [vmem:[#allocation5 + $0x8] sm:$0xff]
    %v45 = vmul.f32 %v43, %v43
    %v46 = vmul.f32 %v44, %v44
    %vm47 = vcmask 261120
    %v48 = vsel %vm47, %v45, 0.0
    %49 = vadd.xlane.f32.xlu0 %v48
    %v50 = vpop.xlane.xlu0 %49
    %v51 = vsel %vm47, %v46, 0.0
    %52 = vadd.xlane.f32.xlu0 %v51
    %v53 = vpop.xlane.xlu0 %52
    %v54 = vmax.f32 %v50, 1e-24
    %v55 = vmax.f32 %v53, 1e-24
    %v56 = vrsqrt.pop %v54
    %v57 = vmul.f32 %v56, %v54
    %v58 = vmul.f32 %v57, %v56
    %v59 = vmul.f32 0.5, %v58
    %v60 = vsub.f32 1.5, %v59
    %v61 = vmul.f32 %v56, %v60
    %vm62 = vweird.f32 %v54
    %vm63 = vweird.f32 %v56
    %vm64 = vmor %vm62, %vm63
    %v65 = vsel %vm64, %v56, %v61
    %v66 = vrsqrt.pop %v55
    %v67 = vmul.f32 %v66, %v55
    %v68 = vmul.f32 %v67, %v66
    %v69 = vmul.f32 0.5, %v68
    %v70 = vsub.f32 1.5, %v69
    %v71 = vmul.f32 %v66, %v70
    %vm72 = vweird.f32 %v55
    %vm73 = vweird.f32 %v66
    %vm74 = vmor %vm72, %vm73
    %v75 = vsel %vm74, %v66, %v71
    %v77 = vsel %vm47, %v42, 0
    %v80 = vsel %vm47, %v43, 0
    %v83 = vsel %vm47, %v44, 0
    %85 = vmatpush.xpose.msra.mxu0 0.0
    %86 = vmatpush.xpose.msra.mxu0 0.0
    %87 = vmatpush.xpose.msra.mxu0 0.0
    %88 = vmatpush.xpose.msra.mxu0 0.0
    %89 = vmatpush.xpose.msra.mxu0 0.0
    %90 = vmatpush.xpose.msra.mxu0 0.0
    %91 = vmatpush.xpose.msra.mxu0 0.0
    %92 = vmatpush.xpose.msra.mxu0 0.0
    %93 = vmatpush.xpose.msra.mxu0 0.0
    %94 = vmatpush.xpose.msra.mxu0 0.0
    %95 = vmatpush.xpose.msra.mxu0 0.0
    %96 = vmatpush.xpose.msra.mxu0 0.0
    %97 = vmatpush.xpose.msra.mxu0 0.0
    %98 = vmatpush.xpose.msra.mxu0 0.0
    %99 = vmatpush.xpose.msra.mxu0 %v83
    %100 = vmatpush.xpose.msra.mxu0 %v80
    %101 = vmatmul.f32.gmra.mxu0 %v77
    %v102 = vpop.f32.mrf.mxu0
    %v103 = vadd.f32 0.0, %v102
    %104 = vdwg.mxu0
    %v107 = vlaneseq
    %v108 = vand.u32 %v107, 127
    %v109 = vperm.slane %v65, %v108
    %v110 = vadd.s32 %v108, 4294967288
    %v111 = vperm.slane %v75, %v110
    %vm112 = vcmask 130112
    %v113 = vsel %vm112, %v111, %v109
    %vm114 = vcmask 1042434
    %v115 = vsel %vm114, %v113, %v113
    %vm116 = vcmask 1043459
    %v117 = vsel %vm116, %v113, %v115
    %vm118 = vcmask 1044484
    %v119 = vsel %vm118, %v113, %v117
    %vm120 = vcmask 1045509
    %v121 = vsel %vm120, %v113, %v119
    %vm122 = vcmask 1046534
    %v123 = vsel %vm122, %v113, %v121
    %vm124 = vcmask 1047559
    %v125 = vsel %vm124, %v113, %v123
    %v127 = vmul.f32 %v103, %v125
    %vm128 = vcmask 130048
    %129 = vst.msk [vmem:[#allocation7] sm:$0xff] %vm128, %v127
    // Predicated region
    $region18: #{tpu_custom_call.1} parent=1 // pred_check
      _
    $region19: #{tpu_custom_call.1} parent=1 // pred_check_branch
      %131 = sbr.rel (0) target = $region21
    $region20: #{tpu_custom_call.1} parent=1 // pred_region
      %133 = vsyncadd [#allocation4], 0
      %s135 = sshll.u32 [#allocation7], 4
      %s136 = int_to_ptr.vmem [resolvable:$true] %s135
      %s137 = sshll.u32 %s2, 4
      %s138 = int_to_ptr.hbm [resolvable:$true] %s137
      %140 = dma.vmem_to_hbm [thread:$0]  %s136, 128, %s138, [#allocation4]
    $region21: #{tpu_custom_call.1} parent=1 // pred_fallthru
      _
    // Predicated region
    $region22: #{tpu_custom_call.1} parent=1 // pred_check
      _
    $region23: #{tpu_custom_call.1} parent=1 // pred_check_branch
      %142 = sbr.rel (0) target = $region25
    $region24: #{tpu_custom_call.1} parent=1 // pred_region
      %144 = dma.done [#allocation4], 128
    $region25: #{tpu_custom_call.1} parent=1 // pred_fallthru
      _
    %145 = vsyncpa [#allocation3], 1
    %146 = vsyncpa [#allocation6], 1
    %147 = vsyncpa [#allocation4], 1

</llo_original>
